<compile_context>
chip_gen: v7x
topology: tpu7x:2x2x1
jax: 0.10.0
libtpu: 0.0.40
codegen_flags: <defaults>
</compile_context>

<pallas_src>
import functools

import jax
import jax.numpy as jnp
from jax import lax
from jax.experimental import pallas as pl
from jax.experimental.pallas import tpu as pltpu


def _round_up(x: int, m: int) -> int:
    return (x + m - 1) // m * m


def _orb_tail_kernel(xs_ref, xf_ref, w_ref, os_ref, of_ref, g_ref,
                     *, ksize, W, data_off):
    """One batch block per grid step. Channels on sublanes, H*W on lanes.

    xs_ref : (B_blk, nf, H*W)        spatial branch (also the skip)
    xf_ref : (B_blk, nf, H*W)        frequency branch (also the skip)
    w_ref  : (k*k, C, C)             per-tap conv weights (C = 2*nf), matmul dtype
    os_ref : (B_blk, nf, H*W)        output: x_s + res_s
    of_ref : (B_blk, nf, H*W)        output: x_f + res_f
    g_ref  : (B_blk, C, Lg) VMEM     flat concat(x_s, x_f) with zero margins,
                                     stored in the matmul dtype (bf16 by default)
    """
    B_blk, nf, HW = xs_ref.shape
    C = 2 * nf
    p = ksize // 2
    D = data_off
    g_len = g_ref.shape[-1]

    # ---- zero ONLY the pad margins; the [D, D+HW) data region is fully
    #      overwritten every step (review #2).
    if D > 0:
        g_ref[:, :, 0:D] = jnp.zeros((B_blk, C, D), g_ref.dtype)
    right = g_len - (D + HW)
    if right > 0:
        g_ref[:, :, D + HW:g_len] = jnp.zeros((B_blk, C, right), g_ref.dtype)

    # ---- fused channel-concat + zero-pad, one cast per input (review #1).
    #      Fill stores are lane-aligned (D is a multiple of 128).
    g_ref[:, 0:nf, D:D + HW] = xs_ref[...].astype(g_ref.dtype)
    g_ref[:, nf:C, D:D + HW] = xf_ref[...].astype(g_ref.dtype)

    # ---- horizontal-wrap masks, one per dw, hoisted out of the tap loops
    #      (review #6). Vertical out-of-range taps read g's zero margins.
    col = jax.lax.broadcasted_iota(jnp.int32, (1, HW), 1) % W
    masks = {dw: jnp.logical_and(col + dw >= 0, col + dw < W)
             for dw in range(-p, p + 1) if dw != 0}

    # ---- conv as k*k accumulated MXU matmuls (C,C) x (C,HW) on shifted slices
    #      of g -- no materialized im2col scratch (review #5). f32 accumulation.
    for b in range(B_blk):
        acc = None
        for kh in range(ksize):
            dh = kh - p
            for kw in range(ksize):
                dw = kw - p
                start = D + dh * W + dw                 # static lane offset
                sl = g_ref[b, :, start:start + HW]      # (C, HW), matmul dtype
                if dw != 0:
                    sl = jnp.where(masks[dw], sl, jnp.zeros_like(sl))
                part = jnp.dot(w_ref[kh * ksize + kw], sl,
                               preferred_element_type=jnp.float32)
                acc = part if acc is None else acc + part

        # torch.chunk(., 2, dim=C) + residual adds in f32; lane-dense stores.
        os_ref[b] = (xs_ref[b].astype(jnp.float32) + acc[0:nf, :]).astype(os_ref.dtype)
        of_ref[b] = (xf_ref[b].astype(jnp.float32) + acc[nf:C, :]).astype(of_ref.dtype)


def original_resolution_block(x_s, x_f, w_tail_oihw, *, ksize,
                              matmul_dtype=jnp.bfloat16, batch_block=None):
    """OriginalResolutionBlock forward.  NCHW in / NCHW out, OIHW weight."""
    N, nf, H, W = x_s.shape
    C = 2 * nf
    HW = H * W
    KKC = ksize * ksize * C
    p = ksize // 2

    # Free row-major reshapes only -- no layout transposes, no HBM copies.
    xs_flat = x_s.reshape(N, nf, HW)
    xf_flat = x_f.reshape(N, nf, HW)

    # OIHW -> (k*k, C_out, C_in): one (C, C) weight slab per tap (kh, kw).
    w_taps = jnp.transpose(w_tail_oihw, (2, 3, 0, 1)).reshape(ksize * ksize, C, C)
    w_taps = w_taps.astype(matmul_dtype)

    # Flat zero-margined buffer: data starts at a 128-aligned lane offset and the
    # margins are wide enough for the largest tap shift (p*W + p on each side).
    data_off = _round_up(p * W + p, 128)
    g_len = _round_up(data_off + HW + p * W + p, 128)

    itemsize = jnp.dtype(x_s.dtype).itemsize
    bytes_m = jnp.dtype(matmul_dtype).itemsize

    # ---- batch folding (review #7): fold elements per grid step up to a VMEM
    #      budget, but keep >= 2 grid steps when N >= 2 so both v7x TensorCores
    #      get work (review #9).
    if batch_block is None:
        per_img = C * g_len * bytes_m + C * HW * 4 + 4 * nf * HW * itemsize
        budget = 8 * 1024 * 1024
        batch_block = max(1, min(N, budget // max(per_img, 1)))
        if N >= 2:
            batch_block = min(batch_block, max(1, N // 2))
    B_blk = max(1, min(int(batch_block), N))
    n_blocks = pl.cdiv(N, B_blk)

    # ---- vmem limit from the actual footprint (+ headroom) (review #8).
    block_bytes = B_blk * nf * HW * itemsize
    g_bytes = B_blk * C * g_len * bytes_m
    w_bytes = KKC * C * bytes_m
    acc_bytes = B_blk * C * HW * 4
    vmem_limit = int(min(
        120 << 20,
        2 * (4 * block_bytes + w_bytes) + g_bytes + acc_bytes + (8 << 20)))

    cost = pl.CostEstimate(
        flops=2 * N * HW * KKC * C,
        transcendentals=0,
        bytes_accessed=4 * N * nf * HW * itemsize + KKC * C * bytes_m,
    )

    kernel = functools.partial(_orb_tail_kernel, ksize=ksize, W=W, data_off=data_off)

    out_s, out_f = pl.pallas_call(
        kernel,
        out_shape=(
            jax.ShapeDtypeStruct((N, nf, HW), x_s.dtype),
            jax.ShapeDtypeStruct((N, nf, HW), x_f.dtype),
        ),
        grid_spec=pltpu.PrefetchScalarGridSpec(
            num_scalar_prefetch=0,
            grid=(n_blocks,),
            in_specs=[
                pl.BlockSpec((B_blk, nf, HW), lambda n: (n, 0, 0)),
                pl.BlockSpec((B_blk, nf, HW), lambda n: (n, 0, 0)),
                pl.BlockSpec((ksize * ksize, C, C), lambda n: (0, 0, 0)),
            ],
            out_specs=[
                pl.BlockSpec((B_blk, nf, HW), lambda n: (n, 0, 0)),
                pl.BlockSpec((B_blk, nf, HW), lambda n: (n, 0, 0)),
            ],
            scratch_shapes=[
                pltpu.VMEM((B_blk, C, g_len), matmul_dtype),
            ],
        ),
        compiler_params=pltpu.CompilerParams(
            dimension_semantics=("parallel",),
            vmem_limit_bytes=vmem_limit,
        ),
        cost_estimate=cost,
    )(xs_flat, xf_flat, w_taps)

    return out_s.reshape(N, nf, H, W), out_f.reshape(N, nf, H, W)


def _reference_nchw(x_s, x_f, w_oihw, *, ksize, matmul_dtype=jnp.float32):
    """Plain-JAX reference with the same operand quantization as the kernel."""
    pad = ksize // 2
    x_cat = jnp.concatenate([x_s, x_f], axis=1).astype(matmul_dtype)
    w = w_oihw.astype(matmul_dtype)
    y = lax.conv_general_dilated(
        x_cat, w, window_strides=(1, 1),
        padding=[(pad, pad), (pad, pad)],
        dimension_numbers=("NCHW", "OIHW", "NCHW"),
        preferred_element_type=jnp.float32,
    )
    nf = x_s.shape[1]
    return x_s + y[:, :nf], x_f + y[:, nf:]


if __name__ == "__main__":
    # Small shapes: batch=2, n_feat=4, spatial=16x16, kernel_size=3
    N, n_feat, H, W = 2, 4, 16, 16
    ksize = 3
    C = 2 * n_feat

    key = jax.random.PRNGKey(0)
    k1, k2, k3 = jax.random.split(key, 3)
    x_s = jax.random.normal(k1, (N, n_feat, H, W), dtype=jnp.float32)
    x_f = jax.random.normal(k2, (N, n_feat, H, W), dtype=jnp.float32)
    # body_tail = conv(n_feat*2, n_feat*2, kernel_size, bias=False) -> OIHW weight
    w_tail = 0.05 * jax.random.normal(k3, (C, C, ksize, ksize), dtype=jnp.float32)

    # bf16 matmul operands (MXU-native on v5e/v6e/v7x), f32 accumulation/residual.
    out_s, out_f = original_resolution_block(x_s, x_f, w_tail, ksize=ksize,
                                             matmul_dtype=jnp.bfloat16)
    jax.block_until_ready(out_s)
    jax.block_until_ready(out_f)
    ref_s, ref_f = _reference_nchw(x_s, x_f, w_tail, ksize=ksize,
                                   matmul_dtype=jnp.bfloat16)
    assert jnp.allclose(out_s, ref_s, atol=5e-3, rtol=5e-3)
    assert jnp.allclose(out_f, ref_f, atol=5e-3, rtol=5e-3)

    # Full-precision path sanity check.
    out_s32, out_f32 = original_resolution_block(x_s, x_f, w_tail, ksize=ksize,
                                                 matmul_dtype=jnp.float32)
    jax.block_until_ready(out_s32)
    jax.block_until_ready(out_f32)
    ref_s32, ref_f32 = _reference_nchw(x_s, x_f, w_tail, ksize=ksize,
                                       matmul_dtype=jnp.float32)
    assert jnp.allclose(out_s32, ref_s32, atol=1e-3, rtol=1e-3)
    assert jnp.allclose(out_f32, ref_f32, atol=1e-3, rtol=1e-3)

    # Batch-folded path (two images per grid step) sanity check.
    N4 = 4
    k4, k5 = jax.random.split(jax.random.PRNGKey(1), 2)
    x_s4 = jax.random.normal(k4, (N4, n_feat, H, W), dtype=jnp.float32)
    x_f4 = jax.random.normal(k5, (N4, n_feat, H, W), dtype=jnp.float32)
    out_s4, out_f4 = original_resolution_block(x_s4, x_f4, w_tail, ksize=ksize,
                                               matmul_dtype=jnp.bfloat16,
                                               batch_block=2)
    jax.block_until_ready(out_s4)
    jax.block_until_ready(out_f4)
    ref_s4, ref_f4 = _reference_nchw(x_s4, x_f4, w_tail, ksize=ksize,
                                     matmul_dtype=jnp.bfloat16)
    assert jnp.allclose(out_s4, ref_s4, atol=5e-3, rtol=5e-3)
    assert jnp.allclose(out_f4, ref_f4, atol=5e-3, rtol=5e-3)

    print("KERNEL_OK")
</pallas_src>

<mosaic_0001>
module attributes {stable_mosaic.version = 11 : i64} {
  func.func @_orb_tail_kernel(%arg0: i32, %arg1: memref<1x4x256xf32, #tpu.memory_space<vmem>>, %arg2: memref<1x4x256xf32, #tpu.memory_space<vmem>>, %arg3: memref<9x8x8xbf16, #tpu.memory_space<vmem>>, %arg4: memref<1x4x256xf32, #tpu.memory_space<vmem>>, %arg5: memref<1x4x256xf32, #tpu.memory_space<vmem>>, %arg6: memref<1x8x512xbf16, #tpu.memory_space<vmem>>) attributes {dimension_semantics = [#tpu.dimension_semantics<parallel>], iteration_bounds = array<i64: 2>, scalar_prefetch = 0 : i64, scratch_operands = 1 : i64, tpu.core_type = #tpu.core_type<tc>, window_params = [{transform_indices = @transform_0, window_bounds = array<i64: 1, 4, 256>}, {transform_indices = @transform_1, window_bounds = array<i64: 1, 4, 256>}, {pipeline_mode = #tpu.pipeline_mode<synchronous>, transform_indices = @transform_2, window_bounds = array<i64: 9, 8, 8>}, {transform_indices = @transform_3, window_bounds = array<i64: 1, 4, 256>}, {transform_indices = @transform_4, window_bounds = array<i64: 1, 4, 256>}]} {
    %cst = arith.constant 0.000000e+00 : bf16
    %0 = vector.broadcast %cst : bf16 to vector<1x8x128xbf16>
    %c0 = arith.constant 0 : index
    %c0_0 = arith.constant 0 : index
    %c0_1 = arith.constant 0 : index
    %1 = vector.load %arg6[%c0, %c0_0, %c0_1] : memref<1x8x512xbf16, #tpu.memory_space<vmem>>, vector<1x8x128xbf16>
    tpu.vector_store %arg6[%c0, %c0_0, %c0_1], %0 {strides = array<i32>} : memref<1x8x512xbf16, #tpu.memory_space<vmem>>, vector<1x8x128xbf16>,
    %cst_2 = arith.constant 0.000000e+00 : bf16
    %2 = vector.broadcast %cst_2 : bf16 to vector<1x8x128xbf16>
    %c0_3 = arith.constant 0 : index
    %c0_4 = arith.constant 0 : index
    %c384 = arith.constant 384 : index
    %3 = vector.load %arg6[%c0_3, %c0_4, %c384] : memref<1x8x512xbf16, #tpu.memory_space<vmem>>, vector<1x8x128xbf16>
    tpu.vector_store %arg6[%c0_3, %c0_4, %c384], %2 {strides = array<i32>} : memref<1x8x512xbf16, #tpu.memory_space<vmem>>, vector<1x8x128xbf16>,
    %c0_5 = arith.constant 0 : index
    %c0_6 = arith.constant 0 : index
    %c0_7 = arith.constant 0 : index
    %4 = vector.load %arg1[%c0_5, %c0_6, %c0_7] : memref<1x4x256xf32, #tpu.memory_space<vmem>>, vector<1x4x256xf32>
    %5 = arith.truncf %4 : vector<1x4x256xf32> to vector<1x4x256xbf16>
    %c0_8 = arith.constant 0 : index
    %c0_9 = arith.constant 0 : index
    %c128 = arith.constant 128 : index
    %6 = vector.load %arg6[%c0_8, %c0_9, %c128] : memref<1x8x512xbf16, #tpu.memory_space<vmem>>, vector<1x4x256xbf16>
    tpu.vector_store %arg6[%c0_8, %c0_9, %c128], %5 {strides = array<i32>} : memref<1x8x512xbf16, #tpu.memory_space<vmem>>, vector<1x4x256xbf16>,
    %c0_10 = arith.constant 0 : index
    %c0_11 = arith.constant 0 : index
    %c0_12 = arith.constant 0 : index
    %7 = vector.load %arg2[%c0_10, %c0_11, %c0_12] : memref<1x4x256xf32, #tpu.memory_space<vmem>>, vector<1x4x256xf32>
    %8 = arith.truncf %7 : vector<1x4x256xf32> to vector<1x4x256xbf16>
    %c0_13 = arith.constant 0 : index
    %c4 = arith.constant 4 : index
    %c128_14 = arith.constant 128 : index
    %9 = vector.load %arg6[%c0_13, %c4, %c128_14] : memref<1x8x512xbf16, #tpu.memory_space<vmem>>, vector<1x4x256xbf16>
    tpu.vector_store %arg6[%c0_13, %c4, %c128_14], %8 {strides = array<i32>} : memref<1x8x512xbf16, #tpu.memory_space<vmem>>, vector<1x4x256xbf16>,
    %10 = tpu.iota {dimensions = array<i32: 1>} : vector<1x256xi32>
    %c16_i32 = arith.constant 16 : i32
    %c0_i32 = arith.constant 0 : i32
    %11 = arith.cmpi eq, %c16_i32, %c0_i32 : i32
    %c1_i32 = arith.constant 1 : i32
    %12 = arith.select %11, %c1_i32, %c16_i32 : i32
    %13 = vector.broadcast %12 : i32 to vector<1x256xi32>
    %14 = arith.remsi %10, %13 : vector<1x256xi32>
    %c0_i32_15 = arith.constant 0 : i32
    %15 = vector.broadcast %c0_i32_15 : i32 to vector<1x256xi32>
    %16 = arith.cmpi ne, %14, %15 : vector<1x256xi32>
    %c0_i32_16 = arith.constant 0 : i32
    %17 = vector.broadcast %c0_i32_16 : i32 to vector<1x256xi32>
    %18 = arith.cmpi slt, %14, %17 : vector<1x256xi32>
    %c0_i32_17 = arith.constant 0 : i32
    %19 = arith.cmpi slt, %12, %c0_i32_17 : i32
    %20 = vector.broadcast %19 : i1 to vector<1x256xi1>
    %21 = vector.broadcast %20 : vector<1x256xi1> to vector<1x256xi1>
    %22 = arith.xori %18, %21 : vector<1x256xi1>
    %23 = arith.andi %22, %16 : vector<1x256xi1>
    %24 = vector.broadcast %12 : i32 to vector<1x256xi32>
    %25 = arith.addi %14, %24 : vector<1x256xi32>
    %26 = arith.select %23, %25, %14 : vector<1x256xi1>, vector<1x256xi32>
    %c-1_i32 = arith.constant -1 : i32
    %27 = vector.broadcast %c-1_i32 : i32 to vector<1x256xi32>
    %28 = arith.addi %26, %27 : vector<1x256xi32>
    %c0_i32_18 = arith.constant 0 : i32
    %29 = vector.broadcast %c0_i32_18 : i32 to vector<1x256xi32>
    %30 = arith.cmpi sge, %28, %29 : vector<1x256xi32>
    %c-1_i32_19 = arith.constant -1 : i32
    %31 = vector.broadcast %c-1_i32_19 : i32 to vector<1x256xi32>
    %32 = arith.addi %26, %31 : vector<1x256xi32>
    %c16_i32_20 = arith.constant 16 : i32
    %33 = vector.broadcast %c16_i32_20 : i32 to vector<1x256xi32>
    %34 = arith.cmpi slt, %32, %33 : vector<1x256xi32>
    %35 = arith.andi %30, %34 : vector<1x256xi1>
    %c1_i32_21 = arith.constant 1 : i32
    %36 = vector.broadcast %c1_i32_21 : i32 to vector<1x256xi32>
    %37 = arith.addi %26, %36 : vector<1x256xi32>
    %c0_i32_22 = arith.constant 0 : i32
    %38 = vector.broadcast %c0_i32_22 : i32 to vector<1x256xi32>
    %39 = arith.cmpi sge, %37, %38 : vector<1x256xi32>
    %c1_i32_23 = arith.constant 1 : i32
    %40 = vector.broadcast %c1_i32_23 : i32 to vector<1x256xi32>
    %41 = arith.addi %26, %40 : vector<1x256xi32>
    %c16_i32_24 = arith.constant 16 : i32
    %42 = vector.broadcast %c16_i32_24 : i32 to vector<1x256xi32>
    %43 = arith.cmpi slt, %41, %42 : vector<1x256xi32>
    %44 = arith.andi %39, %43 : vector<1x256xi1>
    %c0_25 = arith.constant 0 : index
    %c0_26 = arith.constant 0 : index
    %c111 = arith.constant 111 : index
    %45 = vector.load %arg6[%c0_25, %c0_26, %c111] : memref<1x8x512xbf16, #tpu.memory_space<vmem>>, vector<1x8x256xbf16>
    %46 = vector.shape_cast %45 : vector<1x8x256xbf16> to vector<8x256xbf16>
    %cst_27 = arith.constant 0.000000e+00 : bf16
    %47 = vector.broadcast %cst_27 : bf16 to vector<8x256xbf16>
    %48 = vector.shape_cast %35 : vector<1x256xi1> to vector<1x256xi1>
    %49 = vector.broadcast %48 : vector<1x256xi1> to vector<8x256xi1>
    %50 = arith.select %49, %46, %47 : vector<8x256xi1>, vector<8x256xbf16>
    %c0_28 = arith.constant 0 : index
    %c0_29 = arith.constant 0 : index
    %c0_30 = arith.constant 0 : index
    %51 = vector.load %arg3[%c0_28, %c0_29, %c0_30] : memref<9x8x8xbf16, #tpu.memory_space<vmem>>, vector<1x8x8xbf16>
    %52 = vector.shape_cast %51 : vector<1x8x8xbf16> to vector<8x8xbf16>
    %cst_31 = arith.constant dense<0.000000e+00> : vector<8x256xf32>
    %53 = tpu.matmul %52, %50, %cst_31 {dimension_numbers = #tpu.dot_dimension_numbers<[1], [0], [0], [1], [0, 0, 1, 1], [], []>} : vector<8x8xbf16>, vector<8x256xbf16>, vector<8x256xf32> -> vector<8x256xf32>
    %c0_32 = arith.constant 0 : index
    %c0_33 = arith.constant 0 : index
    %c112 = arith.constant 112 : index
    %54 = vector.load %arg6[%c0_32, %c0_33, %c112] : memref<1x8x512xbf16, #tpu.memory_space<vmem>>, vector<1x8x256xbf16>
    %55 = vector.shape_cast %54 : vector<1x8x256xbf16> to vector<8x256xbf16>
    %c1 = arith.constant 1 : index
    %c0_34 = arith.constant 0 : index
    %c0_35 = arith.constant 0 : index
    %56 = vector.load %arg3[%c1, %c0_34, %c0_35] : memref<9x8x8xbf16, #tpu.memory_space<vmem>>, vector<1x8x8xbf16>
    %57 = vector.shape_cast %56 : vector<1x8x8xbf16> to vector<8x8xbf16>
    %cst_36 = arith.constant dense<0.000000e+00> : vector<8x256xf32>
    %58 = tpu.matmul %57, %55, %cst_36 {dimension_numbers = #tpu.dot_dimension_numbers<[1], [0], [0], [1], [0, 0, 1, 1], [], []>} : vector<8x8xbf16>, vector<8x256xbf16>, vector<8x256xf32> -> vector<8x256xf32>
    %59 = arith.addf %53, %58 : vector<8x256xf32>
    %c0_37 = arith.constant 0 : index
    %c0_38 = arith.constant 0 : index
    %c113 = arith.constant 113 : index
    %60 = vector.load %arg6[%c0_37, %c0_38, %c113] : memref<1x8x512xbf16, #tpu.memory_space<vmem>>, vector<1x8x256xbf16>
    %61 = vector.shape_cast %60 : vector<1x8x256xbf16> to vector<8x256xbf16>
    %cst_39 = arith.constant 0.000000e+00 : bf16
    %62 = vector.broadcast %cst_39 : bf16 to vector<8x256xbf16>
    %63 = vector.shape_cast %44 : vector<1x256xi1> to vector<1x256xi1>
    %64 = vector.broadcast %63 : vector<1x256xi1> to vector<8x256xi1>
    %65 = arith.select %64, %61, %62 : vector<8x256xi1>, vector<8x256xbf16>
    %c2 = arith.constant 2 : index
    %c0_40 = arith.constant 0 : index
    %c0_41 = arith.constant 0 : index
    %66 = vector.load %arg3[%c2, %c0_40, %c0_41] : memref<9x8x8xbf16, #tpu.memory_space<vmem>>, vector<1x8x8xbf16>
    %67 = vector.shape_cast %66 : vector<1x8x8xbf16> to vector<8x8xbf16>
    %cst_42 = arith.constant dense<0.000000e+00> : vector<8x256xf32>
    %68 = tpu.matmul %67, %65, %cst_42 {dimension_numbers = #tpu.dot_dimension_numbers<[1], [0], [0], [1], [0, 0, 1, 1], [], []>} : vector<8x8xbf16>, vector<8x256xbf16>, vector<8x256xf32> -> vector<8x256xf32>
    %69 = arith.addf %59, %68 : vector<8x256xf32>
    %c0_43 = arith.constant 0 : index
    %c0_44 = arith.constant 0 : index
    %c127 = arith.constant 127 : index
    %70 = vector.load %arg6[%c0_43, %c0_44, %c127] : memref<1x8x512xbf16, #tpu.memory_space<vmem>>, vector<1x8x256xbf16>
    %71 = vector.shape_cast %70 : vector<1x8x256xbf16> to vector<8x256xbf16>
    %cst_45 = arith.constant 0.000000e+00 : bf16
    %72 = vector.broadcast %cst_45 : bf16 to vector<8x256xbf16>
    %73 = vector.shape_cast %35 : vector<1x256xi1> to vector<1x256xi1>
    %74 = vector.broadcast %73 : vector<1x256xi1> to vector<8x256xi1>
    %75 = arith.select %74, %71, %72 : vector<8x256xi1>, vector<8x256xbf16>
    %c3 = arith.constant 3 : index
    %c0_46 = arith.constant 0 : index
    %c0_47 = arith.constant 0 : index
    %76 = vector.load %arg3[%c3, %c0_46, %c0_47] : memref<9x8x8xbf16, #tpu.memory_space<vmem>>, vector<1x8x8xbf16>
    %77 = vector.shape_cast %76 : vector<1x8x8xbf16> to vector<8x8xbf16>
    %cst_48 = arith.constant dense<0.000000e+00> : vector<8x256xf32>
    %78 = tpu.matmul %77, %75, %cst_48 {dimension_numbers = #tpu.dot_dimension_numbers<[1], [0], [0], [1], [0, 0, 1, 1], [], []>} : vector<8x8xbf16>, vector<8x256xbf16>, vector<8x256xf32> -> vector<8x256xf32>
    %79 = arith.addf %69, %78 : vector<8x256xf32>
    %c0_49 = arith.constant 0 : index
    %c0_50 = arith.constant 0 : index
    %c128_51 = arith.constant 128 : index
    %80 = vector.load %arg6[%c0_49, %c0_50, %c128_51] : memref<1x8x512xbf16, #tpu.memory_space<vmem>>, vector<1x8x256xbf16>
    %81 = vector.shape_cast %80 : vector<1x8x256xbf16> to vector<8x256xbf16>
    %c4_52 = arith.constant 4 : index
    %c0_53 = arith.constant 0 : index
    %c0_54 = arith.constant 0 : index
    %82 = vector.load %arg3[%c4_52, %c0_53, %c0_54] : memref<9x8x8xbf16, #tpu.memory_space<vmem>>, vector<1x8x8xbf16>
    %83 = vector.shape_cast %82 : vector<1x8x8xbf16> to vector<8x8xbf16>
    %cst_55 = arith.constant dense<0.000000e+00> : vector<8x256xf32>
    %84 = tpu.matmul %83, %81, %cst_55 {dimension_numbers = #tpu.dot_dimension_numbers<[1], [0], [0], [1], [0, 0, 1, 1], [], []>} : vector<8x8xbf16>, vector<8x256xbf16>, vector<8x256xf32> -> vector<8x256xf32>
    %85 = arith.addf %79, %84 : vector<8x256xf32>
    %c0_56 = arith.constant 0 : index
    %c0_57 = arith.constant 0 : index
    %c129 = arith.constant 129 : index
    %86 = vector.load %arg6[%c0_56, %c0_57, %c129] : memref<1x8x512xbf16, #tpu.memory_space<vmem>>, vector<1x8x256xbf16>
    %87 = vector.shape_cast %86 : vector<1x8x256xbf16> to vector<8x256xbf16>
    %cst_58 = arith.constant 0.000000e+00 : bf16
    %88 = vector.broadcast %cst_58 : bf16 to vector<8x256xbf16>
    %89 = vector.shape_cast %44 : vector<1x256xi1> to vector<1x256xi1>
    %90 = vector.broadcast %89 : vector<1x256xi1> to vector<8x256xi1>
    %91 = arith.select %90, %87, %88 : vector<8x256xi1>, vector<8x256xbf16>
    %c5 = arith.constant 5 : index
    %c0_59 = arith.constant 0 : index
    %c0_60 = arith.constant 0 : index
    %92 = vector.load %arg3[%c5, %c0_59, %c0_60] : memref<9x8x8xbf16, #tpu.memory_space<vmem>>, vector<1x8x8xbf16>
    %93 = vector.shape_cast %92 : vector<1x8x8xbf16> to vector<8x8xbf16>
    %cst_61 = arith.constant dense<0.000000e+00> : vector<8x256xf32>
    %94 = tpu.matmul %93, %91, %cst_61 {dimension_numbers = #tpu.dot_dimension_numbers<[1], [0], [0], [1], [0, 0, 1, 1], [], []>} : vector<8x8xbf16>, vector<8x256xbf16>, vector<8x256xf32> -> vector<8x256xf32>
    %95 = arith.addf %85, %94 : vector<8x256xf32>
    %c0_62 = arith.constant 0 : index
    %c0_63 = arith.constant 0 : index
    %c143 = arith.constant 143 : index
    %96 = vector.load %arg6[%c0_62, %c0_63, %c143] : memref<1x8x512xbf16, #tpu.memory_space<vmem>>, vector<1x8x256xbf16>
    %97 = vector.shape_cast %96 : vector<1x8x256xbf16> to vector<8x256xbf16>
    %cst_64 = arith.constant 0.000000e+00 : bf16
    %98 = vector.broadcast %cst_64 : bf16 to vector<8x256xbf16>
    %99 = vector.shape_cast %35 : vector<1x256xi1> to vector<1x256xi1>
    %100 = vector.broadcast %99 : vector<1x256xi1> to vector<8x256xi1>
    %101 = arith.select %100, %97, %98 : vector<8x256xi1>, vector<8x256xbf16>
    %c6 = arith.constant 6 : index
    %c0_65 = arith.constant 0 : index
    %c0_66 = arith.constant 0 : index
    %102 = vector.load %arg3[%c6, %c0_65, %c0_66] : memref<9x8x8xbf16, #tpu.memory_space<vmem>>, vector<1x8x8xbf16>
    %103 = vector.shape_cast %102 : vector<1x8x8xbf16> to vector<8x8xbf16>
    %cst_67 = arith.constant dense<0.000000e+00> : vector<8x256xf32>
    %104 = tpu.matmul %103, %101, %cst_67 {dimension_numbers = #tpu.dot_dimension_numbers<[1], [0], [0], [1], [0, 0, 1, 1], [], []>} : vector<8x8xbf16>, vector<8x256xbf16>, vector<8x256xf32> -> vector<8x256xf32>
    %105 = arith.addf %95, %104 : vector<8x256xf32>
    %c0_68 = arith.constant 0 : index
    %c0_69 = arith.constant 0 : index
    %c144 = arith.constant 144 : index
    %106 = vector.load %arg6[%c0_68, %c0_69, %c144] : memref<1x8x512xbf16, #tpu.memory_space<vmem>>, vector<1x8x256xbf16>
    %107 = vector.shape_cast %106 : vector<1x8x256xbf16> to vector<8x256xbf16>
    %c7 = arith.constant 7 : index
    %c0_70 = arith.constant 0 : index
    %c0_71 = arith.constant 0 : index
    %108 = vector.load %arg3[%c7, %c0_70, %c0_71] : memref<9x8x8xbf16, #tpu.memory_space<vmem>>, vector<1x8x8xbf16>
    %109 = vector.shape_cast %108 : vector<1x8x8xbf16> to vector<8x8xbf16>
    %cst_72 = arith.constant dense<0.000000e+00> : vector<8x256xf32>
    %110 = tpu.matmul %109, %107, %cst_72 {dimension_numbers = #tpu.dot_dimension_numbers<[1], [0], [0], [1], [0, 0, 1, 1], [], []>} : vector<8x8xbf16>, vector<8x256xbf16>, vector<8x256xf32> -> vector<8x256xf32>
    %111 = arith.addf %105, %110 : vector<8x256xf32>
    %c0_73 = arith.constant 0 : index
    %c0_74 = arith.constant 0 : index
    %c145 = arith.constant 145 : index
    %112 = vector.load %arg6[%c0_73, %c0_74, %c145] : memref<1x8x512xbf16, #tpu.memory_space<vmem>>, vector<1x8x256xbf16>
    %113 = vector.shape_cast %112 : vector<1x8x256xbf16> to vector<8x256xbf16>
    %cst_75 = arith.constant 0.000000e+00 : bf16
    %114 = vector.broadcast %cst_75 : bf16 to vector<8x256xbf16>
    %115 = vector.shape_cast %44 : vector<1x256xi1> to vector<1x256xi1>
    %116 = vector.broadcast %115 : vector<1x256xi1> to vector<8x256xi1>
    %117 = arith.select %116, %113, %114 : vector<8x256xi1>, vector<8x256xbf16>
    %c8 = arith.constant 8 : index
    %c0_76 = arith.constant 0 : index
    %c0_77 = arith.constant 0 : index
    %118 = vector.load %arg3[%c8, %c0_76, %c0_77] : memref<9x8x8xbf16, #tpu.memory_space<vmem>>, vector<1x8x8xbf16>
    %119 = vector.shape_cast %118 : vector<1x8x8xbf16> to vector<8x8xbf16>
    %cst_78 = arith.constant dense<0.000000e+00> : vector<8x256xf32>
    %120 = tpu.matmul %119, %117, %cst_78 {dimension_numbers = #tpu.dot_dimension_numbers<[1], [0], [0], [1], [0, 0, 1, 1], [], []>} : vector<8x8xbf16>, vector<8x256xbf16>, vector<8x256xf32> -> vector<8x256xf32>
    %121 = arith.addf %111, %120 : vector<8x256xf32>
    %c0_79 = arith.constant 0 : index
    %c0_80 = arith.constant 0 : index
    %c0_81 = arith.constant 0 : index
    %122 = vector.load %arg1[%c0_79, %c0_80, %c0_81] : memref<1x4x256xf32, #tpu.memory_space<vmem>>, vector<1x4x256xf32>
    %123 = vector.shape_cast %122 : vector<1x4x256xf32> to vector<4x256xf32>
    %124 = vector.extract_strided_slice %121 {offsets = [0, 0], sizes = [4, 256], strides = [1, 1]} : vector<8x256xf32> to vector<4x256xf32>
    %125 = arith.addf %123, %124 : vector<4x256xf32>
    %c0_82 = arith.constant 0 : index
    %c0_83 = arith.constant 0 : index
    %c0_84 = arith.constant 0 : index
    %126 = vector.load %arg4[%c0_82, %c0_83, %c0_84] : memref<1x4x256xf32, #tpu.memory_space<vmem>>, vector<1x4x256xf32>
    %127 = vector.shape_cast %126 : vector<1x4x256xf32> to vector<4x256xf32>
    %128 = vector.shape_cast %125 : vector<4x256xf32> to vector<1x4x256xf32>
    tpu.vector_store %arg4[%c0_82, %c0_83, %c0_84], %128 {strides = array<i32>} : memref<1x4x256xf32, #tpu.memory_space<vmem>>, vector<1x4x256xf32>,
    %c0_85 = arith.constant 0 : index
    %c0_86 = arith.constant 0 : index
    %c0_87 = arith.constant 0 : index
    %129 = vector.load %arg2[%c0_85, %c0_86, %c0_87] : memref<1x4x256xf32, #tpu.memory_space<vmem>>, vector<1x4x256xf32>
    %130 = vector.shape_cast %129 : vector<1x4x256xf32> to vector<4x256xf32>
    %131 = vector.extract_strided_slice %121 {offsets = [4, 0], sizes = [4, 256], strides = [1, 1]} : vector<8x256xf32> to vector<4x256xf32>
    %132 = arith.addf %130, %131 : vector<4x256xf32>
    %c0_88 = arith.constant 0 : index
    %c0_89 = arith.constant 0 : index
    %c0_90 = arith.constant 0 : index
    %133 = vector.load %arg5[%c0_88, %c0_89, %c0_90] : memref<1x4x256xf32, #tpu.memory_space<vmem>>, vector<1x4x256xf32>
    %134 = vector.shape_cast %133 : vector<1x4x256xf32> to vector<4x256xf32>
    %135 = vector.shape_cast %132 : vector<4x256xf32> to vector<1x4x256xf32>
    tpu.vector_store %arg5[%c0_88, %c0_89, %c0_90], %135 {strides = array<i32>} : memref<1x4x256xf32, #tpu.memory_space<vmem>>, vector<1x4x256xf32>,
    return
  }
  func.func @transform_0(%arg0: i32) -> (i32, i32, i32) {
    %c0_i32 = arith.constant 0 : i32
    %c0_i32_0 = arith.constant 0 : i32
    %c0_i32_1 = arith.constant 0 : i32
    return %arg0, %c0_i32, %c0_i32_0 : i32, i32, i32
  }
  func.func @transform_1(%arg0: i32) -> (i32, i32, i32) {
    %c0_i32 = arith.constant 0 : i32
    %c0_i32_0 = arith.constant 0 : i32
    %c0_i32_1 = arith.constant 0 : i32
    return %arg0, %c0_i32, %c0_i32_0 : i32, i32, i32
  }
  func.func @transform_2(%arg0: i32) -> (i32, i32, i32) {
    %c0_i32 = arith.constant 0 : i32
    %c0_i32_0 = arith.constant 0 : i32
    %c0_i32_1 = arith.constant 0 : i32
    %c0_i32_2 = arith.constant 0 : i32
    return %c0_i32, %c0_i32_0, %c0_i32_1 : i32, i32, i32
  }
  func.func @transform_3(%arg0: i32) -> (i32, i32, i32) {
    %c0_i32 = arith.constant 0 : i32
    %c0_i32_0 = arith.constant 0 : i32
    %c0_i32_1 = arith.constant 0 : i32
    return %arg0, %c0_i32, %c0_i32_0 : i32, i32, i32
  }
  func.func @transform_4(%arg0: i32) -> (i32, i32, i32) {
    %c0_i32 = arith.constant 0 : i32
    %c0_i32_0 = arith.constant 0 : i32
    %c0_i32_1 = arith.constant 0 : i32
    return %arg0, %c0_i32, %c0_i32_0 : i32, i32, i32
  }
}

</mosaic_0001>

<llo_original>
// kernel: tpu_custom_call.1
$region0: #{tpu_custom_call.1}
  #allocation0 [shape = 'u32[]', space=smem, size = 0x4, offset = 0x4, fixed_abs, tag = 'smem constant byte address 0x4 - core index']
  #allocation1 [shape = 'u32[144,128]{1,0:T(1,128)}', space=vmem, size = 0x12000, scoped, tag = 'internal scratch']
  #allocation2 [shape = 'bf16[1,8,512]{2,1,0:T(8,128)(2,1)}', space=vmem, size = 0x2000, scoped, tag = 'scratch operand']
  %s0 = inlined_call_operand.vmem [shape: f32[2,4,256], index: 0, kind: input, shape index: {}]
  %s1 = inlined_call_operand.vmem [shape: f32[2,4,256], index: 1, kind: input, shape index: {}]
  %s2 = inlined_call_operand.vmem [shape: bf16[9,8,8], index: 2, kind: input, shape index: {}]
  %s3 = inlined_call_operand.hbm [shape: f32[2,4,256], index: 3, kind: output, shape index: {0}]
  %s4 = inlined_call_operand.hbm [shape: f32[2,4,256], index: 4, kind: output, shape index: {1}]
  %5 = xla_tuple %s3, %s4
  %s6 = sld [smem:[#allocation0]]
  $region53: #{tpu_custom_call.1} parent=0
    _
  %s8 = ssub.s32 1, %s6
  %s9 = scalar_select 0, %s8, %s6
  $region1: #{tpu_custom_call.1} parent=0
    #allocation3 [shape = 'u8[8192]{0}', space=vmem, size = 0x2000, scoped, tag = 'output window, operand 0']
    #allocation4 [shape = 's32[2]{0}', space=sflag, size = 0x8, scoped, tag = 'scoped memory for tpu_custom_call.1']
    #allocation5 [shape = 'u8[8192]{0}', space=vmem, size = 0x2000, scoped, tag = 'output window, operand 1']
    #allocation6 [shape = 's32[2]{0}', space=sflag, size = 0x8, scoped, tag = 'scoped memory for tpu_custom_call.1']
    %10 = vsyncpa [#allocation4], 0
    %s11 = scalar_lea.sflag [#allocation4], 1
    %12 = vsyncpa %s11, 0
    %13 = vsyncpa [#allocation6], 0
    %s14 = scalar_lea.sflag [#allocation6], 1
    %15 = vsyncpa %s14, 0
    loop: start=0, step=1, limit=4
    $region2: #{tpu_custom_call.1} parent=1 // loop_pre_header
      _
    $region3: #{tpu_custom_call.1} parent=1 // loop_header
      %s17 = sphi 0, %s21
      %p18 = scmp.ge.s32.totalorder %s17, 4
      %s27 = sphi 0, %s29
      %s30 = sphi 0, %s27
      %s31 = sphi 0, %s30
      %s47 = sphi 0, %s31
      %s53 = sphi 0, %s55
      %s56 = sphi 0, %s53
      %s57 = sphi 0, %s56
      %s73 = sphi 0, %s57
      %s77 = sphi 0, %s77
      %s79 = sphi 0, %s77
      %s80 = sphi 0, %s79
      %s94 = sphi 0, %s80
      %s100 = sphi 0, %s102
      %s103 = sphi 0, %s100
      %s104 = sphi 0, %s103
      %s120 = sphi 0, %s104
      %s126 = sphi 0, %s128
      %s129 = sphi 0, %s126
      %s130 = sphi 0, %s129
      %s146 = sphi 0, %s130
    $region4: #{tpu_custom_call.1} parent=1 // loop_header_branch
      %20 = sbr.rel (%p18) target = $region8
    $region5: #{tpu_custom_call.1} parent=1 // loop_body
      %s22 = ssub.s32 %s17, 1
      %s23 = ssub.s32 %s17, 2
      %s24 = sadd.s32 %s17, 1
      %s25 = ssub.s32 %s17, %s24
      %p26 = scmp.eq.s32.totalorder %s25, 0
      %s28 = sadd.s32 %s27, 1
      %s29 = scalar_select %p26, %s27, %s28
      %p32 = pneg %p26
      %p33 = scmp.eq.s32.totalorder %s17, 1
      %p34 = por %p32, %p33
      %p35 = scmp.ne.s32.totalorder %s27, %s30
      %p36 = scmp.eq.s32.totalorder %s17, 0
      %p37 = por %p35, %p36
      %p38 = scmp.ne.s32.totalorder %s27, %s30
      %p39 = scmp.eq.s32.totalorder %s22, 1
      %p40 = por %p38, %p39
      %p41 = scmp.ne.s32.totalorder %s30, %s31
      %p42 = scmp.eq.s32.totalorder %s22, 0
      %p43 = por %p41, %p42
      %p44 = scmp.ne.s32.totalorder %s30, %s31
      %p45 = scmp.eq.s32.totalorder %s23, 1
      %p46 = por %p44, %p45
      %p48 = scmp.ne.s32.totalorder %s31, %s47
      %p49 = scmp.eq.s32.totalorder %s23, 0
      %p50 = por %p48, %p49
      %s51 = ssub.s32 %s17, %s24
      %p52 = scmp.eq.s32.totalorder %s51, 0
      %s54 = sadd.s32 %s53, 1
      %s55 = scalar_select %p52, %s53, %s54
      %p58 = pneg %p52
      %p59 = scmp.eq.s32.totalorder %s17, 1
      %p60 = por %p58, %p59
      %p61 = scmp.ne.s32.totalorder %s53, %s56
      %p62 = scmp.eq.s32.totalorder %s17, 0
      %p63 = por %p61, %p62
      %p64 = scmp.ne.s32.totalorder %s53, %s56
      %p65 = scmp.eq.s32.totalorder %s22, 1
      %p66 = por %p64, %p65
      %p67 = scmp.ne.s32.totalorder %s56, %s57
      %p68 = scmp.eq.s32.totalorder %s22, 0
      %p69 = por %p67, %p68
      %p70 = scmp.ne.s32.totalorder %s56, %s57
      %p71 = scmp.eq.s32.totalorder %s23, 1
      %p72 = por %p70, %p71
      %p74 = scmp.ne.s32.totalorder %s57, %s73
      %p75 = scmp.eq.s32.totalorder %s23, 0
      %p76 = por %p74, %p75
      %s78 = sadd.s32 %s77, 1
      %p81 = scmp.eq.s32.totalorder %s17, 1
      %p82 = scmp.ne.s32.totalorder %s77, %s79
      %p83 = scmp.eq.s32.totalorder %s17, 0
      %p84 = por %p82, %p83
      %p85 = scmp.ne.s32.totalorder %s77, %s79
      %p86 = scmp.eq.s32.totalorder %s22, 1
      %p87 = por %p85, %p86
      %p88 = scmp.ne.s32.totalorder %s79, %s80
      %p89 = scmp.eq.s32.totalorder %s22, 0
      %p90 = por %p88, %p89
      %p91 = scmp.ne.s32.totalorder %s79, %s80
      %p92 = scmp.eq.s32.totalorder %s23, 1
      %p93 = por %p91, %p92
      %p95 = scmp.ne.s32.totalorder %s80, %s94
      %p96 = scmp.eq.s32.totalorder %s23, 0
      %p97 = por %p95, %p96
      %s98 = ssub.s32 %s17, %s24
      %p99 = scmp.eq.s32.totalorder %s98, 0
      %s101 = sadd.s32 %s100, 1
      %s102 = scalar_select %p99, %s100, %s101
      %p105 = pneg %p99
      %p106 = scmp.eq.s32.totalorder %s17, 1
      %p107 = por %p105, %p106
      %p108 = scmp.ne.s32.totalorder %s100, %s103
      %p109 = scmp.eq.s32.totalorder %s17, 0
      %p110 = por %p108, %p109
      %p111 = scmp.ne.s32.totalorder %s100, %s103
      %p112 = scmp.eq.s32.totalorder %s22, 1
      %p113 = por %p111, %p112
      %p114 = scmp.ne.s32.totalorder %s103, %s104
      %p115 = scmp.eq.s32.totalorder %s22, 0
      %p116 = por %p114, %p115
      %p117 = scmp.ne.s32.totalorder %s103, %s104
      %p118 = scmp.eq.s32.totalorder %s23, 1
      %p119 = por %p117, %p118
      %p121 = scmp.ne.s32.totalorder %s104, %s120
      %p122 = scmp.eq.s32.totalorder %s23, 0
      %p123 = por %p121, %p122
      %s124 = ssub.s32 %s17, %s24
      %p125 = scmp.eq.s32.totalorder %s124, 0
      %s127 = sadd.s32 %s126, 1
      %s128 = scalar_select %p125, %s126, %s127
      %p131 = pneg %p125
      %p132 = scmp.eq.s32.totalorder %s17, 1
      %p133 = por %p131, %p132
      %p134 = scmp.ne.s32.totalorder %s126, %s129
      %p135 = scmp.eq.s32.totalorder %s17, 0
      %p136 = por %p134, %p135
      %p137 = scmp.ne.s32.totalorder %s126, %s129
      %p138 = scmp.eq.s32.totalorder %s22, 1
      %p139 = por %p137, %p138
      %p140 = scmp.ne.s32.totalorder %s129, %s130
      %p141 = scmp.eq.s32.totalorder %s22, 0
      %p142 = por %p140, %p141
      %p143 = scmp.ne.s32.totalorder %s129, %s130
      %p144 = scmp.eq.s32.totalorder %s23, 1
      %p145 = por %p143, %p144
      %p147 = scmp.ne.s32.totalorder %s130, %s146
      %p148 = scmp.eq.s32.totalorder %s23, 0
      %p149 = por %p147, %p148
      %p150 = scmp.le.s32.totalorder 1, %s17
      %p151 = scmp.lt.s32.totalorder %s17, 3
      %p152 = pnand %p150, %p151
      %p153 = pneg %p152
      // Predicated region
      $region9: #{tpu_custom_call.1} parent=5 // pred_check
        _
      $region10: #{tpu_custom_call.1} parent=5 // pred_check_branch
        %155 = sbr.rel (%p152) target = $region12
      $region11: #{tpu_custom_call.1} parent=5 // pred_region
        %s156 = ssub.s32 %s17, 1
        // Predicated region
        $region13: #{tpu_custom_call.1} parent=11 // pred_check
          %p157 = pneg %p90
        $region14: #{tpu_custom_call.1} parent=11 // pred_check_branch
          %159 = sbr.rel (%p157) target = $region16
        $region15: #{tpu_custom_call.1} parent=11 // pred_region
          _
        $region16: #{tpu_custom_call.1} parent=11 // pred_fallthru
          _
      $region12: #{tpu_custom_call.1} parent=5 // pred_fallthru
        _
      %p160 = scmp.lt.s32.totalorder %s17, 2
      // Predicated region
      $region17: #{tpu_custom_call.1} parent=5 // pred_check
        %p161 = pneg %p160
      $region18: #{tpu_custom_call.1} parent=5 // pred_check_branch
        %163 = sbr.rel (%p161) target = $region20
      $region19: #{tpu_custom_call.1} parent=5 // pred_region
        // Predicated region
        $region21: #{tpu_custom_call.1} parent=19 // pred_check
          %p164 = pneg %p37
        $region22: #{tpu_custom_call.1} parent=19 // pred_check_branch
          %166 = sbr.rel (%p164) target = $region24
        $region23: #{tpu_custom_call.1} parent=19 // pred_region
          %p167 = scmp.lt.s32.totalorder %s17, 1
          %s168 = scalar_select %p167, %s17, 1
          %s169 = smul.addr %s168, 2
          %s170 = smul.addr %s169, 4
          %s171 = scalar_lea.vmem %s0, %s170
        $region24: #{tpu_custom_call.1} parent=19 // pred_fallthru
          _
        // Predicated region
        $region25: #{tpu_custom_call.1} parent=19 // pred_check
          %p172 = pneg %p63
        $region26: #{tpu_custom_call.1} parent=19 // pred_check_branch
          %174 = sbr.rel (%p172) target = $region28
        $region27: #{tpu_custom_call.1} parent=19 // pred_region
          %p175 = scmp.lt.s32.totalorder %s17, 1
          %s176 = scalar_select %p175, %s17, 1
          %s177 = smul.addr %s176, 2
          %s178 = smul.addr %s177, 4
          %s179 = scalar_lea.vmem %s1, %s178
        $region28: #{tpu_custom_call.1} parent=19 // pred_fallthru
          _
      $region20: #{tpu_custom_call.1} parent=5 // pred_fallthru
        _
      %p180 = scmp.le.s32.totalorder 1, %s17
      %p181 = scmp.lt.s32.totalorder %s17, 3
      %p182 = pnand %p180, %p181
      %p183 = pneg %p182
      // Predicated region
      $region29: #{tpu_custom_call.1} parent=5 // pred_check
        _
      $region30: #{tpu_custom_call.1} parent=5 // pred_check_branch
        %185 = sbr.rel (%p182) target = $region32
      $region31: #{tpu_custom_call.1} parent=5 // pred_region
        %s186 = ssub.s32 %s17, 1
        %p187 = scmp.lt.s32.totalorder %s22, 1
        %s188 = scalar_select %p187, %s22, 1
        %s189 = smul.addr %s188, 2
        %s190 = smul.addr %s189, 4
        %s191 = scalar_lea.vmem %s0, %s190
        %p192 = pneg %p43
        %p193 = pneg %p40
        %p194 = scmp.lt.s32.totalorder %s22, 1
        %s195 = scalar_select %p194, %s22, 1
        %s196 = smul.addr %s195, 2
        %s197 = smul.addr %s196, 4
        %s198 = scalar_lea.vmem %s1, %s197
        %p199 = pneg %p69
        %p200 = pneg %p66
        %p201 = pneg %p90
        %p202 = pneg %p87
        %p203 = pneg %p116
        %p204 = pneg %p113
        %s205 = sand.u32 %s103, 1
        %s206 = scalar_lea.sflag [#allocation4], %s205
        %s207 = sand.u32 %s103, 1
        %s208 = smul.addr %s207, 8
        %s209 = scalar_lea.vmem [#allocation3], %s208
        %p210 = pneg %p142
        %p211 = pneg %p139
        %s212 = sand.u32 %s129, 1
        %s213 = scalar_lea.sflag [#allocation6], %s212
        %s214 = sand.u32 %s129, 1
        %s215 = smul.addr %s214, 8
        %s216 = scalar_lea.vmem [#allocation5], %s215
        %p217 = scmp.lt.s32.totalorder %s22, 1
        %s218 = scalar_select %p217, %s22, 1
        %s219 = smul.addr %s218, 2
        %s220 = smul.addr %s219, 4
        %s221 = scalar_lea.vmem %s0, %s220
        %p222 = scmp.lt.s32.totalorder %s22, 1
        %s223 = scalar_select %p222, %s22, 1
        %s224 = smul.addr %s223, 2
        %s225 = smul.addr %s224, 4
        %s226 = scalar_lea.vmem %s1, %s225
        %230 = vst [vmem:[#allocation2] sm:$0xf] 0
        %231 = vst [vmem:[#allocation2 + $0xc] sm:$0xf] 0
        %v232 = vld [vmem:[%s221] sm:$0xff]
        %v234 = vcombine.high %v232, %v232
        %v236 = vpack.c.bf16 %v232, %v232
        %v237 = vpack.c.bf16 %v234, %v234
        %v240 = vunpack.c.l.b16 %v236
        %v241 = vunpack.c.l.b16 %v237
        %v242 = vpack.c.b16 %v241, %v240
        %244 = vst [vmem:[#allocation2 + $0x4] sm:$0x33] %v242
        %v245 = vld [vmem:[%s226] sm:$0xff]
        %v247 = vcombine.high %v245, %v245
        %v249 = vpack.c.bf16 %v245, %v245
        %v250 = vpack.c.bf16 %v247, %v247
        %v253 = vunpack.c.l.b16 %v249
        %v254 = vunpack.c.l.b16 %v250
        %v255 = vpack.c.b16 %v254, %v253
        %v256 = vrot.slane %v255, 6
        %258 = vst [vmem:[#allocation2 + $0x4] sm:$0xcc] %v256
        %v259 = vlaneseq
        %v260 = vand.u32 %v259, 127
        %v261 = vadd.s32 %v260, 128
        %vm262 = vcmp.lt.s32.totalorder %v260, 0
        %v263 = vsub.s32 0, %v260
        %v264 = vsel %vm262, %v263, %v260
        %v265 = vshrl.u32 %v264, 4
        %v266 = vand.u32 %v264, 15
        %v267 = vsub.s32 0, %v266
        %v268 = vsel %vm262, %v267, %v266
        %vm269 = vcmp.lt.s32.totalorder %v261, 0
        %v270 = vsub.s32 0, %v261
        %v271 = vsel %vm269, %v270, %v261
        %v272 = vshrl.u32 %v271, 4
        %v273 = vand.u32 %v271, 15
        %v274 = vsub.s32 0, %v273
        %v275 = vsel %vm269, %v274, %v273
        %vm276 = vcmp.ne.s32.totalorder %v268, 0
        %vm277 = vcmp.ne.s32.totalorder %v275, 0
        %vm278 = vcmp.lt.s32.totalorder %v268, 0
        %vm279 = vcmp.lt.s32.totalorder %v275, 0
        %vm280 = vmand %vm278, %vm276
        %vm281 = vmand %vm279, %vm277
        %v282 = vadd.s32 %v268, 16
        %v283 = vadd.s32 %v275, 16
        %v284 = vsel %vm280, %v282, %v268
        %v285 = vsel %vm281, %v283, %v275
        %v286 = vadd.s32 %v284, 4294967295
        %v287 = vadd.s32 %v285, 4294967295
        %vm288 = vcmp.ge.s32.totalorder %v286, 0
        %vm289 = vcmp.ge.s32.totalorder %v287, 0
        %vm290 = vcmp.lt.s32.totalorder %v286, 16
        %vm291 = vcmp.lt.s32.totalorder %v287, 16
        %vm292 = vmand %vm288, %vm290
        %vm293 = vmand %vm289, %vm291
        %v294 = vadd.s32 %v284, 1
        %v295 = vadd.s32 %v285, 1
        %vm296 = vcmp.ge.s32.totalorder %v294, 0
        %vm297 = vcmp.ge.s32.totalorder %v295, 0
        %vm298 = vcmp.lt.s32.totalorder %v294, 16
        %vm299 = vcmp.lt.s32.totalorder %v295, 16
        %vm300 = vmand %vm296, %vm298
        %vm301 = vmand %vm297, %vm299
        %v302 = vld [vmem:[#allocation2] sm:$0xff]
        %v303 = vld [vmem:[#allocation2 + $0x8] sm:$0xf]
        %v304 = vsel %vm292, 1, 0
        %v305 = vsel %vm293, 1, 0
        %vm306 = vcmp.eq.s32.totalorder %v304, 1
        %vm307 = vcmp.eq.s32.totalorder %v305, 1
        %vm308 = vmpackc.low %vm307, %vm306
        %v309 = vsel %vm308, 65537, 0
        %310 = vrot.lane.b32.xlu0 %v309, 111
        %v311 = vpop.permute.xlu0 %310
        %v312 = vrot.slane %v311, 4
        %vm313 = vcmask 908288
        %v314 = vsel %vm313, %v312, %v311
        %vm315 = vcmp.ne.s16.totalorder %v314, 0
        %vm316 = vcmp.ne.s16.totalorder %v312, 0
        %v317 = vsel %vm315, %v302, 0
        %v318 = vsel %vm316, %v303, 0
        %v319 = vld [vmem:[%s2] sm:$0xf]
        %s320 = scalar_lea.vmem %s2, 4
        %v321 = vld [vmem:[%s320] sm:$0xf]
        %v324 = vunpack.c.l.b16 %v302
        %v325 = vunpack.c.h.b16 %v302
        %v326 = vunpack.c.l.b16 %v303
        %v327 = vpack.c.b16 %v324, %v324
        %v328 = vpack.c.b16 %v325, %v325
        %v329 = vpack.c.b16 %v326, %v326
        %330 = vrot.lane.b32.xlu0 %v327, 16
        %v331 = vpop.permute.xlu0 %330
        %332 = vrot.lane.b32.xlu0 %v328, 16
        %v333 = vpop.permute.xlu0 %332
        %334 = vrot.lane.b32.xlu0 %v329, 16
        %v335 = vpop.permute.xlu0 %334
        %vm336 = vcmask 130048
        %v337 = vsel %vm336, %v331, %v333
        %v338 = vsel %vm336, %v333, %v335
        %vm339 = vcmask 64512
        %v341 = vsel %vm339, %v321, 0
        %vm343 = vcmask 1043456
        %v345 = vsel %vm343, %v337, 0
        %v348 = vsel %vm343, %v338, 0
        %350 = vmatprep.subr.bf16.mxu0 %v348
        %351 = vmatpush1.bf16.msra.mxu0 %v345
        %352 = vmatprep.subr.bf16.mxu0 0
        %353 = vmatpush1.bf16.msra.mxu0 0
        %354 = vmatprep.subr.bf16.mxu0 0
        %355 = vmatpush1.bf16.msra.mxu0 0
        %356 = vmatprep.subr.bf16.mxu0 0
        %357 = vmatpush1.bf16.msra.mxu0 0
        %358 = vmatprep.subr.bf16.mxu0 0
        %359 = vmatpush1.bf16.msra.mxu0 0
        %360 = vmatprep.subr.bf16.mxu0 0
        %361 = vmatpush1.bf16.msra.mxu0 0
        %362 = vmatprep.subr.bf16.mxu0 0
        %363 = vmatpush1.bf16.msra.mxu0 0
        %364 = vmatprep.subr.bf16.mxu0 0
        %365 = vmatpush1.bf16.msra.mxu0 0
        %366 = vmatprep.subr.bf16.mxu0 0
        %367 = vmatpush1.bf16.msra.mxu0 0
        %368 = vmatprep.subr.bf16.mxu0 0
        %369 = vmatpush1.bf16.msra.mxu0 0
        %370 = vmatprep.subr.bf16.mxu0 0
        %371 = vmatpush1.bf16.msra.mxu0 0
        %372 = vmatprep.subr.bf16.mxu0 0
        %373 = vmatpush1.bf16.msra.mxu0 0
        %374 = vmatprep.subr.bf16.mxu0 0
        %375 = vmatpush1.bf16.msra.mxu0 0
        %376 = vmatprep.subr.bf16.mxu0 0
        %377 = vmatpush1.bf16.msra.mxu0 0
        %378 = vmatprep.subr.bf16.mxu0 0
        %379 = vmatpush1.bf16.msra.mxu0 0
        %380 = vmatprep.subr.bf16.mxu0 0
        %381 = vmatpush1.bf16.msra.mxu0 0
        %382 = vmatprep.mubr.bf16.mxu0 0
        %383 = vmatmul.mubr.bf16.gmra.mrb[0].mxu0 %v341
        %v384 = vpop.f32.mrb[0].mxu0
        %v385 = vadd.f32 0.0, %v384
        %v386 = vpop.f32.mrb[0].mxu0
        %v387 = vadd.f32 0.0, %v386
        %v388 = vpop.f32.mrb[0].mxu0
        %v389 = vpop.f32.mrb[0].mxu0
        %390 = vdwg.mxu0
        %v393 = vunpack.c.l.b16 %v317
        %v394 = vunpack.c.h.b16 %v317
        %v395 = vunpack.c.l.b16 %v318
        %v396 = vpack.c.b16 %v393, %v393
        %v397 = vpack.c.b16 %v394, %v394
        %v398 = vpack.c.b16 %v395, %v395
        %399 = vrot.lane.b32.xlu0 %v396, 17
        %v400 = vpop.permute.xlu0 %399
        %401 = vrot.lane.b32.xlu0 %v397, 17
        %v402 = vpop.permute.xlu0 %401
        %403 = vrot.lane.b32.xlu0 %v398, 17
        %v404 = vpop.permute.xlu0 %403
        %vm405 = vcmask 138240
        %v406 = vsel %vm405, %v400, %v402
        %v407 = vsel %vm405, %v402, %v404
        %v409 = vsel %vm339, %v319, 0
        %v412 = vsel %vm343, %v406, 0
        %v415 = vsel %vm343, %v407, 0
        %417 = vmatprep.subr.bf16.mxu0 %v415
        %418 = vmatpush1.bf16.msra.mxu0 %v412
        %419 = vmatprep.subr.bf16.mxu0 0
        %420 = vmatpush1.bf16.msra.mxu0 0
        %421 = vmatprep.subr.bf16.mxu0 0
        %422 = vmatpush1.bf16.msra.mxu0 0
        %423 = vmatprep.subr.bf16.mxu0 0
        %424 = vmatpush1.bf16.msra.mxu0 0
        %425 = vmatprep.subr.bf16.mxu0 0
        %426 = vmatpush1.bf16.msra.mxu0 0
        %427 = vmatprep.subr.bf16.mxu0 0
        %428 = vmatpush1.bf16.msra.mxu0 0
        %429 = vmatprep.subr.bf16.mxu0 0
        %430 = vmatpush1.bf16.msra.mxu0 0
        %431 = vmatprep.subr.bf16.mxu0 0
        %432 = vmatpush1.bf16.msra.mxu0 0
        %433 = vmatprep.subr.bf16.mxu0 0
        %434 = vmatpush1.bf16.msra.mxu0 0
        %435 = vmatprep.subr.bf16.mxu0 0
        %436 = vmatpush1.bf16.msra.mxu0 0
        %437 = vmatprep.subr.bf16.mxu0 0
        %438 = vmatpush1.bf16.msra.mxu0 0
        %439 = vmatprep.subr.bf16.mxu0 0
        %440 = vmatpush1.bf16.msra.mxu0 0
        %441 = vmatprep.subr.bf16.mxu0 0
        %442 = vmatpush1.bf16.msra.mxu0 0
        %443 = vmatprep.subr.bf16.mxu0 0
        %444 = vmatpush1.bf16.msra.mxu0 0
        %445 = vmatprep.subr.bf16.mxu0 0
        %446 = vmatpush1.bf16.msra.mxu0 0
        %447 = vmatprep.subr.bf16.mxu0 0
        %448 = vmatpush1.bf16.msra.mxu0 0
        %449 = vmatprep.mubr.bf16.mxu0 0
        %450 = vmatmul.mubr.bf16.gmra.mrb[0].mxu0 %v409
        %v451 = vpop.f32.mrb[0].mxu0
        %v452 = vadd.f32 %v385, %v451
        %v453 = vpop.f32.mrb[0].mxu0
        %v454 = vadd.f32 %v387, %v453
        %v455 = vpop.f32.mrb[0].mxu0
        %v456 = vpop.f32.mrb[0].mxu0
        %457 = vdwg.mxu0
        %v458 = vsel %vm300, 1, 0
        %v459 = vsel %vm301, 1, 0
        %vm460 = vcmp.eq.s32.totalorder %v458, 1
        %vm461 = vcmp.eq.s32.totalorder %v459, 1
        %vm462 = vmpackc.low %vm461, %vm460
        %v463 = vsel %vm462, 65537, 0
        %464 = vrot.lane.b32.xlu0 %v463, 113
        %v465 = vpop.permute.xlu0 %464
        %v466 = vrot.slane %v465, 4
        %vm467 = vcmask 924672
        %v468 = vsel %vm467, %v466, %v465
        %vm469 = vcmp.ne.s16.totalorder %v468, 0
        %vm470 = vcmp.ne.s16.totalorder %v466, 0
        %v471 = vsel %vm469, %v302, 0
        %v472 = vsel %vm470, %v303, 0
        %s473 = scalar_lea.vmem %s2, 8
        %v474 = vld [vmem:[%s473] sm:$0xf]
        %v477 = vunpack.c.l.b16 %v471
        %v478 = vunpack.c.h.b16 %v471
        %v479 = vunpack.c.l.b16 %v472
        %v480 = vpack.c.b16 %v477, %v477
        %v481 = vpack.c.b16 %v478, %v478
        %v482 = vpack.c.b16 %v479, %v479
        %483 = vrot.lane.b32.xlu0 %v480, 15
        %v484 = vpop.permute.xlu0 %483
        %485 = vrot.lane.b32.xlu0 %v481, 15
        %v486 = vpop.permute.xlu0 %485
        %487 = vrot.lane.b32.xlu0 %v482, 15
        %v488 = vpop.permute.xlu0 %487
        %vm489 = vcmask 121856
        %v490 = vsel %vm489, %v484, %v486
        %v491 = vsel %vm489, %v486, %v488
        %v493 = vsel %vm339, %v474, 0
        %v496 = vsel %vm343, %v490, 0
        %v499 = vsel %vm343, %v491, 0
        %501 = vmatprep.subr.bf16.mxu0 %v499
        %502 = vmatpush1.bf16.msra.mxu0 %v496
        %503 = vmatprep.subr.bf16.mxu0 0
        %504 = vmatpush1.bf16.msra.mxu0 0
        %505 = vmatprep.subr.bf16.mxu0 0
        %506 = vmatpush1.bf16.msra.mxu0 0
        %507 = vmatprep.subr.bf16.mxu0 0
        %508 = vmatpush1.bf16.msra.mxu0 0
        %509 = vmatprep.subr.bf16.mxu0 0
        %510 = vmatpush1.bf16.msra.mxu0 0
        %511 = vmatprep.subr.bf16.mxu0 0
        %512 = vmatpush1.bf16.msra.mxu0 0
        %513 = vmatprep.subr.bf16.mxu0 0
        %514 = vmatpush1.bf16.msra.mxu0 0
        %515 = vmatprep.subr.bf16.mxu0 0
        %516 = vmatpush1.bf16.msra.mxu0 0
        %517 = vmatprep.subr.bf16.mxu0 0
        %518 = vmatpush1.bf16.msra.mxu0 0
        %519 = vmatprep.subr.bf16.mxu0 0
        %520 = vmatpush1.bf16.msra.mxu0 0
        %521 = vmatprep.subr.bf16.mxu0 0
        %522 = vmatpush1.bf16.msra.mxu0 0
        %523 = vmatprep.subr.bf16.mxu0 0
        %524 = vmatpush1.bf16.msra.mxu0 0
        %525 = vmatprep.subr.bf16.mxu0 0
        %526 = vmatpush1.bf16.msra.mxu0 0
        %527 = vmatprep.subr.bf16.mxu0 0
        %528 = vmatpush1.bf16.msra.mxu0 0
        %529 = vmatprep.subr.bf16.mxu0 0
        %530 = vmatpush1.bf16.msra.mxu0 0
        %531 = vmatprep.subr.bf16.mxu0 0
        %532 = vmatpush1.bf16.msra.mxu0 0
        %533 = vmatprep.mubr.bf16.mxu0 0
        %534 = vmatmul.mubr.bf16.gmra.mrb[0].mxu0 %v493
        %v535 = vpop.f32.mrb[0].mxu0
        %v536 = vadd.f32 0.0, %v535
        %v537 = vpop.f32.mrb[0].mxu0
        %v538 = vadd.f32 0.0, %v537
        %v539 = vpop.f32.mrb[0].mxu0
        %v540 = vpop.f32.mrb[0].mxu0
        %541 = vdwg.mxu0
        %v542 = vadd.f32 %v452, %v536
        %v543 = vadd.f32 %v454, %v538
        %544 = vrot.lane.b32.xlu0 %v309, 127
        %v545 = vpop.permute.xlu0 %544
        %v546 = vrot.slane %v545, 4
        %vm547 = vcmask 1039360
        %v548 = vsel %vm547, %v546, %v545
        %vm549 = vcmp.ne.s16.totalorder %v548, 0
        %vm550 = vcmp.ne.s16.totalorder %v546, 0
        %v551 = vsel %vm549, %v302, 0
        %v552 = vsel %vm550, %v303, 0
        %s553 = scalar_lea.vmem %s2, 12
        %v554 = vld [vmem:[%s553] sm:$0xf]
        %v557 = vunpack.c.l.b16 %v551
        %v558 = vunpack.c.h.b16 %v551
        %v559 = vunpack.c.l.b16 %v552
        %v560 = vpack.c.b16 %v557, %v557
        %v561 = vpack.c.b16 %v558, %v558
        %v562 = vpack.c.b16 %v559, %v559
        %563 = vrot.lane.b32.xlu0 %v560, 1
        %v564 = vpop.permute.xlu0 %563
        %565 = vrot.lane.b32.xlu0 %v561, 1
        %v566 = vpop.permute.xlu0 %565
        %567 = vrot.lane.b32.xlu0 %v562, 1
        %v568 = vpop.permute.xlu0 %567
        %vm569 = vcmask 7168
        %v570 = vsel %vm569, %v564, %v566
        %v571 = vsel %vm569, %v566, %v568
        %v573 = vsel %vm339, %v554, 0
        %v576 = vsel %vm343, %v570, 0
        %v579 = vsel %vm343, %v571, 0
        %581 = vmatprep.subr.bf16.mxu0 %v579
        %582 = vmatpush1.bf16.msra.mxu0 %v576
        %583 = vmatprep.subr.bf16.mxu0 0
        %584 = vmatpush1.bf16.msra.mxu0 0
        %585 = vmatprep.subr.bf16.mxu0 0
        %586 = vmatpush1.bf16.msra.mxu0 0
        %587 = vmatprep.subr.bf16.mxu0 0
        %588 = vmatpush1.bf16.msra.mxu0 0
        %589 = vmatprep.subr.bf16.mxu0 0
        %590 = vmatpush1.bf16.msra.mxu0 0
        %591 = vmatprep.subr.bf16.mxu0 0
        %592 = vmatpush1.bf16.msra.mxu0 0
        %593 = vmatprep.subr.bf16.mxu0 0
        %594 = vmatpush1.bf16.msra.mxu0 0
        %595 = vmatprep.subr.bf16.mxu0 0
        %596 = vmatpush1.bf16.msra.mxu0 0
        %597 = vmatprep.subr.bf16.mxu0 0
        %598 = vmatpush1.bf16.msra.mxu0 0
        %599 = vmatprep.subr.bf16.mxu0 0
        %600 = vmatpush1.bf16.msra.mxu0 0
        %601 = vmatprep.subr.bf16.mxu0 0
        %602 = vmatpush1.bf16.msra.mxu0 0
        %603 = vmatprep.subr.bf16.mxu0 0
        %604 = vmatpush1.bf16.msra.mxu0 0
        %605 = vmatprep.subr.bf16.mxu0 0
        %606 = vmatpush1.bf16.msra.mxu0 0
        %607 = vmatprep.subr.bf16.mxu0 0
        %608 = vmatpush1.bf16.msra.mxu0 0
        %609 = vmatprep.subr.bf16.mxu0 0
        %610 = vmatpush1.bf16.msra.mxu0 0
        %611 = vmatprep.subr.bf16.mxu0 0
        %612 = vmatpush1.bf16.msra.mxu0 0
        %613 = vmatprep.mubr.bf16.mxu0 0
        %614 = vmatmul.mubr.bf16.gmra.mrb[0].mxu0 %v573
        %v615 = vpop.f32.mrb[0].mxu0
        %v616 = vadd.f32 0.0, %v615
        %v617 = vpop.f32.mrb[0].mxu0
        %v618 = vadd.f32 0.0, %v617
        %v619 = vpop.f32.mrb[0].mxu0
        %v620 = vpop.f32.mrb[0].mxu0
        %621 = vdwg.mxu0
        %v622 = vadd.f32 %v542, %v616
        %v623 = vadd.f32 %v543, %v618
        %v624 = vld [vmem:[#allocation2 + $0x4] sm:$0xff]
        %s625 = scalar_lea.vmem %s2, 16
        %v626 = vld [vmem:[%s625] sm:$0xf]
        %v628 = vunpack.c.l.b16 %v624
        %v629 = vunpack.c.h.b16 %v624
        %v630 = vpack.c.b16 %v628, %v628
        %v631 = vpack.c.b16 %v629, %v629
        %v633 = vsel %vm339, %v626, 0
        %v636 = vsel %vm343, %v630, 0
        %v639 = vsel %vm343, %v631, 0
        %641 = vmatprep.subr.bf16.mxu0 %v639
        %642 = vmatpush1.bf16.msra.mxu0 %v636
        %643 = vmatprep.subr.bf16.mxu0 0
        %644 = vmatpush1.bf16.msra.mxu0 0
        %645 = vmatprep.subr.bf16.mxu0 0
        %646 = vmatpush1.bf16.msra.mxu0 0
        %647 = vmatprep.subr.bf16.mxu0 0
        %648 = vmatpush1.bf16.msra.mxu0 0
        %649 = vmatprep.subr.bf16.mxu0 0
        %650 = vmatpush1.bf16.msra.mxu0 0
        %651 = vmatprep.subr.bf16.mxu0 0
        %652 = vmatpush1.bf16.msra.mxu0 0
        %653 = vmatprep.subr.bf16.mxu0 0
        %654 = vmatpush1.bf16.msra.mxu0 0
        %655 = vmatprep.subr.bf16.mxu0 0
        %656 = vmatpush1.bf16.msra.mxu0 0
        %657 = vmatprep.subr.bf16.mxu0 0
        %658 = vmatpush1.bf16.msra.mxu0 0
        %659 = vmatprep.subr.bf16.mxu0 0
        %660 = vmatpush1.bf16.msra.mxu0 0
        %661 = vmatprep.subr.bf16.mxu0 0
        %662 = vmatpush1.bf16.msra.mxu0 0
        %663 = vmatprep.subr.bf16.mxu0 0
        %664 = vmatpush1.bf16.msra.mxu0 0
        %665 = vmatprep.subr.bf16.mxu0 0
        %666 = vmatpush1.bf16.msra.mxu0 0
        %667 = vmatprep.subr.bf16.mxu0 0
        %668 = vmatpush1.bf16.msra.mxu0 0
        %669 = vmatprep.subr.bf16.mxu0 0
        %670 = vmatpush1.bf16.msra.mxu0 0
        %671 = vmatprep.subr.bf16.mxu0 0
        %672 = vmatpush1.bf16.msra.mxu0 0
        %673 = vmatprep.mubr.bf16.mxu0 0
        %674 = vmatmul.mubr.bf16.gmra.mrb[0].mxu0 %v633
        %v675 = vpop.f32.mrb[0].mxu0
        %v676 = vadd.f32 0.0, %v675
        %v677 = vpop.f32.mrb[0].mxu0
        %v678 = vadd.f32 0.0, %v677
        %v679 = vpop.f32.mrb[0].mxu0
        %v680 = vpop.f32.mrb[0].mxu0
        %681 = vdwg.mxu0
        %v682 = vadd.f32 %v622, %v676
        %v683 = vadd.f32 %v623, %v678
        %v684 = vld [vmem:[#allocation2 + $0x4] sm:$0xff]
        %v685 = vld [vmem:[#allocation2 + $0xc] sm:$0xf]
        %686 = vrot.lane.b32.xlu0 %v463, 1
        %v687 = vpop.permute.xlu0 %686
        %v688 = vrot.slane %v687, 4
        %v689 = vsel %vm569, %v688, %v687
        %vm690 = vcmp.ne.s16.totalorder %v689, 0
        %vm691 = vcmp.ne.s16.totalorder %v688, 0
        %v692 = vsel %vm690, %v684, 0
        %v693 = vsel %vm691, %v685, 0
        %s694 = scalar_lea.vmem %s2, 20
        %v695 = vld [vmem:[%s694] sm:$0xf]
        %v698 = vunpack.c.l.b16 %v692
        %v699 = vunpack.c.h.b16 %v692
        %v700 = vunpack.c.l.b16 %v693
        %v701 = vpack.c.b16 %v698, %v698
        %v702 = vpack.c.b16 %v699, %v699
        %v703 = vpack.c.b16 %v700, %v700
        %704 = vrot.lane.b32.xlu0 %v701, 127
        %v705 = vpop.permute.xlu0 %704
        %706 = vrot.lane.b32.xlu0 %v702, 127
        %v707 = vpop.permute.xlu0 %706
        %708 = vrot.lane.b32.xlu0 %v703, 127
        %v709 = vpop.permute.xlu0 %708
        %v710 = vsel %vm547, %v705, %v707
        %v711 = vsel %vm547, %v707, %v709
        %v713 = vsel %vm339, %v695, 0
        %v716 = vsel %vm343, %v710, 0
        %v719 = vsel %vm343, %v711, 0
        %721 = vmatprep.subr.bf16.mxu0 %v719
        %722 = vmatpush1.bf16.msra.mxu0 %v716
        %723 = vmatprep.subr.bf16.mxu0 0
        %724 = vmatpush1.bf16.msra.mxu0 0
        %725 = vmatprep.subr.bf16.mxu0 0
        %726 = vmatpush1.bf16.msra.mxu0 0
        %727 = vmatprep.subr.bf16.mxu0 0
        %728 = vmatpush1.bf16.msra.mxu0 0
        %729 = vmatprep.subr.bf16.mxu0 0
        %730 = vmatpush1.bf16.msra.mxu0 0
        %731 = vmatprep.subr.bf16.mxu0 0
        %732 = vmatpush1.bf16.msra.mxu0 0
        %733 = vmatprep.subr.bf16.mxu0 0
        %734 = vmatpush1.bf16.msra.mxu0 0
        %735 = vmatprep.subr.bf16.mxu0 0
        %736 = vmatpush1.bf16.msra.mxu0 0
        %737 = vmatprep.subr.bf16.mxu0 0
        %738 = vmatpush1.bf16.msra.mxu0 0
        %739 = vmatprep.subr.bf16.mxu0 0
        %740 = vmatpush1.bf16.msra.mxu0 0
        %741 = vmatprep.subr.bf16.mxu0 0
        %742 = vmatpush1.bf16.msra.mxu0 0
        %743 = vmatprep.subr.bf16.mxu0 0
        %744 = vmatpush1.bf16.msra.mxu0 0
        %745 = vmatprep.subr.bf16.mxu0 0
        %746 = vmatpush1.bf16.msra.mxu0 0
        %747 = vmatprep.subr.bf16.mxu0 0
        %748 = vmatpush1.bf16.msra.mxu0 0
        %749 = vmatprep.subr.bf16.mxu0 0
        %750 = vmatpush1.bf16.msra.mxu0 0
        %751 = vmatprep.subr.bf16.mxu0 0
        %752 = vmatpush1.bf16.msra.mxu0 0
        %753 = vmatprep.mubr.bf16.mxu0 0
        %754 = vmatmul.mubr.bf16.gmra.mrb[0].mxu0 %v713
        %v755 = vpop.f32.mrb[0].mxu0
        %v756 = vadd.f32 0.0, %v755
        %v757 = vpop.f32.mrb[0].mxu0
        %v758 = vadd.f32 0.0, %v757
        %v759 = vpop.f32.mrb[0].mxu0
        %v760 = vpop.f32.mrb[0].mxu0
        %761 = vdwg.mxu0
        %v762 = vadd.f32 %v682, %v756
        %v763 = vadd.f32 %v683, %v758
        %764 = vrot.lane.b32.xlu0 %v309, 15
        %v765 = vpop.permute.xlu0 %764
        %v766 = vrot.slane %v765, 4
        %v767 = vsel %vm489, %v766, %v765
        %vm768 = vcmp.ne.s16.totalorder %v767, 0
        %vm769 = vcmp.ne.s16.totalorder %v766, 0
        %v770 = vsel %vm768, %v684, 0
        %v771 = vsel %vm769, %v685, 0
        %s772 = scalar_lea.vmem %s2, 24
        %v773 = vld [vmem:[%s772] sm:$0xf]
        %v776 = vunpack.c.l.b16 %v770
        %v777 = vunpack.c.h.b16 %v770
        %v778 = vunpack.c.l.b16 %v771
        %v779 = vpack.c.b16 %v776, %v776
        %v780 = vpack.c.b16 %v777, %v777
        %v781 = vpack.c.b16 %v778, %v778
        %782 = vrot.lane.b32.xlu0 %v779, 113
        %v783 = vpop.permute.xlu0 %782
        %784 = vrot.lane.b32.xlu0 %v780, 113
        %v785 = vpop.permute.xlu0 %784
        %786 = vrot.lane.b32.xlu0 %v781, 113
        %v787 = vpop.permute.xlu0 %786
        %v788 = vsel %vm467, %v783, %v785
        %v789 = vsel %vm467, %v785, %v787
        %v791 = vsel %vm339, %v773, 0
        %v794 = vsel %vm343, %v788, 0
        %v797 = vsel %vm343, %v789, 0
        %799 = vmatprep.subr.bf16.mxu0 %v797
        %800 = vmatpush1.bf16.msra.mxu0 %v794
        %801 = vmatprep.subr.bf16.mxu0 0
        %802 = vmatpush1.bf16.msra.mxu0 0
        %803 = vmatprep.subr.bf16.mxu0 0
        %804 = vmatpush1.bf16.msra.mxu0 0
        %805 = vmatprep.subr.bf16.mxu0 0
        %806 = vmatpush1.bf16.msra.mxu0 0
        %807 = vmatprep.subr.bf16.mxu0 0
        %808 = vmatpush1.bf16.msra.mxu0 0
        %809 = vmatprep.subr.bf16.mxu0 0
        %810 = vmatpush1.bf16.msra.mxu0 0
        %811 = vmatprep.subr.bf16.mxu0 0
        %812 = vmatpush1.bf16.msra.mxu0 0
        %813 = vmatprep.subr.bf16.mxu0 0
        %814 = vmatpush1.bf16.msra.mxu0 0
        %815 = vmatprep.subr.bf16.mxu0 0
        %816 = vmatpush1.bf16.msra.mxu0 0
        %817 = vmatprep.subr.bf16.mxu0 0
        %818 = vmatpush1.bf16.msra.mxu0 0
        %819 = vmatprep.subr.bf16.mxu0 0
        %820 = vmatpush1.bf16.msra.mxu0 0
        %821 = vmatprep.subr.bf16.mxu0 0
        %822 = vmatpush1.bf16.msra.mxu0 0
        %823 = vmatprep.subr.bf16.mxu0 0
        %824 = vmatpush1.bf16.msra.mxu0 0
        %825 = vmatprep.subr.bf16.mxu0 0
        %826 = vmatpush1.bf16.msra.mxu0 0
        %827 = vmatprep.subr.bf16.mxu0 0
        %828 = vmatpush1.bf16.msra.mxu0 0
        %829 = vmatprep.subr.bf16.mxu0 0
        %830 = vmatpush1.bf16.msra.mxu0 0
        %831 = vmatprep.mubr.bf16.mxu0 0
        %832 = vmatmul.mubr.bf16.gmra.mrb[0].mxu0 %v791
        %v833 = vpop.f32.mrb[0].mxu0
        %v834 = vadd.f32 0.0, %v833
        %v835 = vpop.f32.mrb[0].mxu0
        %v836 = vadd.f32 0.0, %v835
        %v837 = vpop.f32.mrb[0].mxu0
        %v838 = vpop.f32.mrb[0].mxu0
        %839 = vdwg.mxu0
        %v840 = vadd.f32 %v762, %v834
        %v841 = vadd.f32 %v763, %v836
        %s842 = scalar_lea.vmem %s2, 28
        %v843 = vld [vmem:[%s842] sm:$0xf]
        %v846 = vunpack.c.l.b16 %v684
        %v847 = vunpack.c.h.b16 %v684
        %v848 = vunpack.c.l.b16 %v685
        %v849 = vpack.c.b16 %v846, %v846
        %v850 = vpack.c.b16 %v847, %v847
        %v851 = vpack.c.b16 %v848, %v848
        %852 = vrot.lane.b32.xlu0 %v849, 112
        %v853 = vpop.permute.xlu0 %852
        %854 = vrot.lane.b32.xlu0 %v850, 112
        %v855 = vpop.permute.xlu0 %854
        %856 = vrot.lane.b32.xlu0 %v851, 112
        %v857 = vpop.permute.xlu0 %856
        %vm858 = vcmask 916480
        %v859 = vsel %vm858, %v853, %v855
        %v860 = vsel %vm858, %v855, %v857
        %v862 = vsel %vm339, %v843, 0
        %v865 = vsel %vm343, %v859, 0
        %v868 = vsel %vm343, %v860, 0
        %870 = vmatprep.subr.bf16.mxu0 %v868
        %871 = vmatpush1.bf16.msra.mxu0 %v865
        %872 = vmatprep.subr.bf16.mxu0 0
        %873 = vmatpush1.bf16.msra.mxu0 0
        %874 = vmatprep.subr.bf16.mxu0 0
        %875 = vmatpush1.bf16.msra.mxu0 0
        %876 = vmatprep.subr.bf16.mxu0 0
        %877 = vmatpush1.bf16.msra.mxu0 0
        %878 = vmatprep.subr.bf16.mxu0 0
        %879 = vmatpush1.bf16.msra.mxu0 0
        %880 = vmatprep.subr.bf16.mxu0 0
        %881 = vmatpush1.bf16.msra.mxu0 0
        %882 = vmatprep.subr.bf16.mxu0 0
        %883 = vmatpush1.bf16.msra.mxu0 0
        %884 = vmatprep.subr.bf16.mxu0 0
        %885 = vmatpush1.bf16.msra.mxu0 0
        %886 = vmatprep.subr.bf16.mxu0 0
        %887 = vmatpush1.bf16.msra.mxu0 0
        %888 = vmatprep.subr.bf16.mxu0 0
        %889 = vmatpush1.bf16.msra.mxu0 0
        %890 = vmatprep.subr.bf16.mxu0 0
        %891 = vmatpush1.bf16.msra.mxu0 0
        %892 = vmatprep.subr.bf16.mxu0 0
        %893 = vmatpush1.bf16.msra.mxu0 0
        %894 = vmatprep.subr.bf16.mxu0 0
        %895 = vmatpush1.bf16.msra.mxu0 0
        %896 = vmatprep.subr.bf16.mxu0 0
        %897 = vmatpush1.bf16.msra.mxu0 0
        %898 = vmatprep.subr.bf16.mxu0 0
        %899 = vmatpush1.bf16.msra.mxu0 0
        %900 = vmatprep.subr.bf16.mxu0 0
        %901 = vmatpush1.bf16.msra.mxu0 0
        %902 = vmatprep.mubr.bf16.mxu0 0
        %903 = vmatmul.mubr.bf16.gmra.mrb[0].mxu0 %v862
        %v904 = vpop.f32.mrb[0].mxu0
        %v905 = vadd.f32 0.0, %v904
        %v906 = vpop.f32.mrb[0].mxu0
        %v907 = vadd.f32 0.0, %v906
        %v908 = vpop.f32.mrb[0].mxu0
        %v909 = vpop.f32.mrb[0].mxu0
        %910 = vdwg.mxu0
        %v911 = vadd.f32 %v840, %v905
        %v912 = vadd.f32 %v841, %v907
        %913 = vrot.lane.b32.xlu0 %v463, 17
        %v914 = vpop.permute.xlu0 %913
        %v915 = vrot.slane %v914, 4
        %v916 = vsel %vm405, %v915, %v914
        %vm917 = vcmp.ne.s16.totalorder %v916, 0
        %vm918 = vcmp.ne.s16.totalorder %v915, 0
        %v919 = vsel %vm917, %v684, 0
        %v920 = vsel %vm918, %v685, 0
        %s921 = scalar_lea.vmem %s2, 32
        %v922 = vld [vmem:[%s921] sm:$0xf]
        %v925 = vunpack.c.l.b16 %v919
        %v926 = vunpack.c.h.b16 %v919
        %v927 = vunpack.c.l.b16 %v920
        %v928 = vpack.c.b16 %v925, %v925
        %v929 = vpack.c.b16 %v926, %v926
        %v930 = vpack.c.b16 %v927, %v927
        %931 = vrot.lane.b32.xlu0 %v928, 111
        %v932 = vpop.permute.xlu0 %931
        %933 = vrot.lane.b32.xlu0 %v929, 111
        %v934 = vpop.permute.xlu0 %933
        %935 = vrot.lane.b32.xlu0 %v930, 111
        %v936 = vpop.permute.xlu0 %935
        %v937 = vsel %vm313, %v932, %v934
        %v938 = vsel %vm313, %v934, %v936
        %v940 = vsel %vm339, %v922, 0
        %v943 = vsel %vm343, %v937, 0
        %v946 = vsel %vm343, %v938, 0
        %948 = vmatprep.subr.bf16.mxu0 %v946
        %949 = vmatpush1.bf16.msra.mxu0 %v943
        %950 = vmatprep.subr.bf16.mxu0 0
        %951 = vmatpush1.bf16.msra.mxu0 0
        %952 = vmatprep.subr.bf16.mxu0 0
        %953 = vmatpush1.bf16.msra.mxu0 0
        %954 = vmatprep.subr.bf16.mxu0 0
        %955 = vmatpush1.bf16.msra.mxu0 0
        %956 = vmatprep.subr.bf16.mxu0 0
        %957 = vmatpush1.bf16.msra.mxu0 0
        %958 = vmatprep.subr.bf16.mxu0 0
        %959 = vmatpush1.bf16.msra.mxu0 0
        %960 = vmatprep.subr.bf16.mxu0 0
        %961 = vmatpush1.bf16.msra.mxu0 0
        %962 = vmatprep.subr.bf16.mxu0 0
        %963 = vmatpush1.bf16.msra.mxu0 0
        %964 = vmatprep.subr.bf16.mxu0 0
        %965 = vmatpush1.bf16.msra.mxu0 0
        %966 = vmatprep.subr.bf16.mxu0 0
        %967 = vmatpush1.bf16.msra.mxu0 0
        %968 = vmatprep.subr.bf16.mxu0 0
        %969 = vmatpush1.bf16.msra.mxu0 0
        %970 = vmatprep.subr.bf16.mxu0 0
        %971 = vmatpush1.bf16.msra.mxu0 0
        %972 = vmatprep.subr.bf16.mxu0 0
        %973 = vmatpush1.bf16.msra.mxu0 0
        %974 = vmatprep.subr.bf16.mxu0 0
        %975 = vmatpush1.bf16.msra.mxu0 0
        %976 = vmatprep.subr.bf16.mxu0 0
        %977 = vmatpush1.bf16.msra.mxu0 0
        %978 = vmatprep.subr.bf16.mxu0 0
        %979 = vmatpush1.bf16.msra.mxu0 0
        %980 = vmatprep.mubr.bf16.mxu0 0
        %981 = vmatmul.mubr.bf16.gmra.mrb[0].mxu0 %v940
        %v982 = vpop.f32.mrb[0].mxu0
        %v983 = vadd.f32 0.0, %v982
        %v984 = vpop.f32.mrb[0].mxu0
        %v985 = vadd.f32 0.0, %v984
        %v986 = vpop.f32.mrb[0].mxu0
        %v987 = vpop.f32.mrb[0].mxu0
        %988 = vdwg.mxu0
        %v989 = vadd.f32 %v911, %v983
        %v990 = vadd.f32 %v912, %v985
        %v991 = vld [vmem:[%s221] sm:$0xff]
        %v994 = vcombine.low %v989, %v990
        %v996 = vadd.f32 %v991, %v994
        %997 = vst [vmem:[%s209] sm:$0xff] %v996
        %v998 = vld [vmem:[%s226] sm:$0xff]
        %v999 = vcombine.high %v989, %v990
        %v1001 = vadd.f32 %v998, %v999
        %1002 = vst [vmem:[%s216] sm:$0xff] %v1001
        %s1003 = sand.u32 %s103, 1
        %s1004 = scalar_lea.sflag [#allocation4], %s1003
        %s1005 = sand.u32 %s103, 1
        %s1006 = smul.addr %s1005, 8
        %s1007 = scalar_lea.vmem [#allocation3], %s1006
        %s1008 = sand.u32 %s129, 1
        %s1009 = scalar_lea.sflag [#allocation6], %s1008
        %s1010 = sand.u32 %s129, 1
        %s1011 = smul.addr %s1010, 8
        %s1012 = scalar_lea.vmem [#allocation5], %s1011
        // Predicated region
        $region33: #{tpu_custom_call.1} parent=31 // pred_check
          %p1013 = pneg %p113
        $region34: #{tpu_custom_call.1} parent=31 // pred_check_branch
          %1015 = sbr.rel (%p1013) target = $region36
        $region35: #{tpu_custom_call.1} parent=31 // pred_region
          %s1017 = ssub.s32 128, 128
          %1018 = vsyncadd %s1004, %s1017
          %s1019 = smul.addr %s22, 2
          %s1020 = smul.addr %s1019, 64
          %s1021 = scalar_lea.hbm %s3, %s1020
          %s1023 = sshll.u32 %s1007, 4
          %s1024 = int_to_ptr.vmem [resolvable:$true] %s1023
          %1026 = dma.vmem_to_hbm [thread:$0]  %s1024, 128, %s1021, %s1004
        $region36: #{tpu_custom_call.1} parent=31 // pred_fallthru
          _
        // Predicated region
        $region37: #{tpu_custom_call.1} parent=31 // pred_check
          %p1027 = pneg %p139
        $region38: #{tpu_custom_call.1} parent=31 // pred_check_branch
          %1029 = sbr.rel (%p1027) target = $region40
        $region39: #{tpu_custom_call.1} parent=31 // pred_region
          %s1031 = ssub.s32 128, 128
          %1032 = vsyncadd %s1009, %s1031
          %s1033 = smul.addr %s22, 2
          %s1034 = smul.addr %s1033, 64
          %s1035 = scalar_lea.hbm %s4, %s1034
          %s1037 = sshll.u32 %s1012, 4
          %s1038 = int_to_ptr.vmem [resolvable:$true] %s1037
          %1040 = dma.vmem_to_hbm [thread:$0]  %s1038, 128, %s1035, %s1009
        $region40: #{tpu_custom_call.1} parent=31 // pred_fallthru
          _
      $region32: #{tpu_custom_call.1} parent=5 // pred_fallthru
        _
      %p1041 = scmp.le.s32.totalorder 2, %s17
      // Predicated region
      $region41: #{tpu_custom_call.1} parent=5 // pred_check
        %p1042 = pneg %p1041
      $region42: #{tpu_custom_call.1} parent=5 // pred_check_branch
        %1044 = sbr.rel (%p1042) target = $region44
      $region43: #{tpu_custom_call.1} parent=5 // pred_region
        %s1045 = ssub.s32 %s17, 2
        // Predicated region
        $region45: #{tpu_custom_call.1} parent=43 // pred_check
          %p1046 = pneg %p119
        $region46: #{tpu_custom_call.1} parent=43 // pred_check_branch
          %1048 = sbr.rel (%p1046) target = $region48
        $region47: #{tpu_custom_call.1} parent=43 // pred_region
          %s1049 = sand.u32 %s104, 1
          %s1050 = scalar_lea.sflag [#allocation4], %s1049
          %s1051 = sand.u32 %s104, 1
          %s1052 = smul.addr %s1051, 8
          %s1053 = scalar_lea.vmem [#allocation3], %s1052
          %1054 = dma.done %s1050, 128
        $region48: #{tpu_custom_call.1} parent=43 // pred_fallthru
          _
        // Predicated region
        $region49: #{tpu_custom_call.1} parent=43 // pred_check
          %p1055 = pneg %p145
        $region50: #{tpu_custom_call.1} parent=43 // pred_check_branch
          %1057 = sbr.rel (%p1055) target = $region52
        $region51: #{tpu_custom_call.1} parent=43 // pred_region
          %s1058 = sand.u32 %s130, 1
          %s1059 = scalar_lea.sflag [#allocation6], %s1058
          %s1060 = sand.u32 %s130, 1
          %s1061 = smul.addr %s1060, 8
          %s1062 = scalar_lea.vmem [#allocation5], %s1061
          %1063 = dma.done %s1059, 128
        $region52: #{tpu_custom_call.1} parent=43 // pred_fallthru
          _
      $region44: #{tpu_custom_call.1} parent=5 // pred_fallthru
        _
    $region6: #{tpu_custom_call.1} parent=1 // loop_footer
      %s21 = sadd.s32 1, %s17
    $region7: #{tpu_custom_call.1} parent=1 // loop_footer_branch
      %16 = sbr.rel target = $region3
    $region8: #{tpu_custom_call.1} parent=1 // loop_exit
      _
    %1064 = vsyncpa [#allocation4], 1
    %s1065 = scalar_lea.sflag [#allocation4], 1
    %1066 = vsyncpa %s1065, 1
    %1067 = vsyncpa [#allocation6], 1
    %s1068 = scalar_lea.sflag [#allocation6], 1
    %1069 = vsyncpa %s1068, 1

</llo_original>
